<compile_context>
chip_gen: v6e
topology: v6e:2x2x1
jax: 0.10.0
libtpu: 0.0.40
codegen_flags: <defaults>
</compile_context>

<pallas_src>
import jax
import jax.numpy as jnp
from jax.experimental import pallas as pl
from jax.experimental.pallas import tpu as pltpu


def _round_up(x, m):
    return -(-x // m) * m


def _make_ploss_kernel(num_class: int, n_rows: int, tile_rows: int, row_tiles: int):
    """All args are Python ints -> folded into the kernel as immediates."""

    def kernel(logits_ref, labels_ref, sum_ref, cnt_ref, acc_sc, cnt_sc, col_sc):
        s = pl.program_id(0)   # split (TensorCore) index
        i = pl.program_id(1)   # row-tile index within this split

        @pl.when(i == 0)
        def _():
            acc_sc[...] = jnp.zeros_like(acc_sc)
            cnt_sc[...] = jnp.zeros_like(cnt_sc)
            # lane-index table, filled once per split instead of per step
            col_sc[...] = jax.lax.broadcasted_iota(jnp.int32, col_sc.shape, 1)

        raw = logits_ref[...]                                  # (TR, C) native dtype
        logits = raw.astype(jnp.float32)                       # (TR, C) f32
        labels = labels_ref[...]                               # (TR, 1) int32

        # Numerically-stable log-sum-exp.
        m = jnp.max(logits, axis=-1, keepdims=True)            # (TR, 1)
        p = jnp.exp(logits - m)                                 # EUP slot
        lse = jnp.log(jnp.sum(p, axis=-1, keepdims=True))      # (TR, 1)

        # Label-logit extraction on the native-dtype tile (no extra f32 pass).
        lab = jnp.sum(jnp.where(col_sc[...] == labels, raw, 0.0),
                      axis=-1, keepdims=True).astype(jnp.float32)
        per_row = (lse + m) - lab                               # = -log softmax[label]

        # Row mask: label <= k-1 AND the row lies inside the (un-padded) input.
        base = (s * row_tiles + i) * tile_rows
        row_ids = base + jax.lax.broadcasted_iota(jnp.int32, (tile_rows, 1), 0)
        valid_b = jnp.logical_and(labels <= num_class - 1, row_ids < n_rows)

        # jnp.where (not multiply) so garbage/NaN rows from a ragged tail cannot
        # poison the accumulator.
        acc_sc[...] += jnp.where(valid_b, per_row, 0.0)
        cnt_sc[...] += valid_b.astype(jnp.float32)

        @pl.when(i == pl.num_programs(1) - 1)
        def _():
            # One cross-sublane reduction, once per split.
            sum_ref[...] = jnp.sum(acc_sc[...], keepdims=True)   # (1, 1)
            cnt_ref[...] = jnp.sum(cnt_sc[...], keepdims=True)   # (1, 1)

    return kernel


def ploss(outputs, labels, num_class, *, num_splits=None, tile_rows=None,
          f32_tile_budget=4 * 1024 * 1024):
    """outputs: (N, C) float logits (any float dtype); labels: (N,) int; num_class: python int."""
    N, C = outputs.shape
    num_class = int(num_class)
    itemsize = jnp.dtype(outputs.dtype).itemsize
    c_pad = _round_up(C, 128)          # lane-padded class dim (VMEM footprint)

    # Split the row range across TensorCores only on dual-core chips (v7x).
    if num_splits is None:
        kind = jax.devices()[0].device_kind.lower()
        num_splits = 2 if ("v7" in kind or "tpu7" in kind) else 1
    if N < 16:
        num_splits = 1
    per_split_rows = -(-N // num_splits)

    if tile_rows is None:
        if N < 8:
            tile_rows = N                       # block row dim == full array dim
        else:
            tr_budget = max(8, (f32_tile_budget // (c_pad * 4)) // 8 * 8)
            tile_rows = int(min(tr_budget, 1024, max(8, per_split_rows // 8 * 8)))

    total_tiles = -(-N // tile_rows)
    if total_tiles < num_splits:
        num_splits = 1
    row_tiles = -(-total_tiles // num_splits)   # inner grid extent per split
    last_block = total_tiles - 1

    # NOTE: no padding of outputs/labels — ragged tail is masked in-kernel.
    labels2d = labels.astype(jnp.int32).reshape(N, 1)

    def row_block(s, i):
        # Clamp so steps past the real tile range re-read the last (partial) block;
        # those rows are masked out in-kernel via the global-row test.
        return (jnp.minimum(s * row_tiles + i, last_block), 0)

    vmem_est = (2 * tile_rows * c_pad * itemsize   # double-buffered logits tiles
                + 2 * tile_rows * 128 * 4          # double-buffered label tiles (lane-padded)
                + 2 * tile_rows * 128 * 4          # (TR,1) accumulators (lane-padded)
                + tile_rows * c_pad * 4            # iota scratch
                + 4 * tile_rows * c_pad * 4        # in-kernel f32 temporaries headroom
                + 2 * 1024 * 1024)
    # Cap well under v7x's 64 MiB physical VMEM; still above v5e's 16 MiB default.
    vmem_limit = int(min(48 * 1024 * 1024, max(16 * 1024 * 1024, vmem_est)))

    cost = pl.CostEstimate(
        flops=6 * N * C,
        transcendentals=N * C + N,
        bytes_accessed=N * C * itemsize + N * 4 + 2 * num_splits * 4,
    )

    kernel = _make_ploss_kernel(num_class, N, tile_rows, row_tiles)

    sum_out, cnt_out = pl.pallas_call(
        kernel,
        out_shape=(jax.ShapeDtypeStruct((num_splits, 1, 1), jnp.float32),
                   jax.ShapeDtypeStruct((num_splits, 1, 1), jnp.float32)),
        grid_spec=pltpu.PrefetchScalarGridSpec(
            num_scalar_prefetch=0,
            grid=(num_splits, row_tiles),
            in_specs=[
                pl.BlockSpec((tile_rows, C), row_block),
                pl.BlockSpec((tile_rows, 1), row_block),
            ],
            out_specs=[
                pl.BlockSpec((None, 1, 1), lambda s, i: (s, 0, 0)),
                pl.BlockSpec((None, 1, 1), lambda s, i: (s, 0, 0)),
            ],
            scratch_shapes=[
                pltpu.VMEM((tile_rows, 1), jnp.float32),   # masked loss accumulator
                pltpu.VMEM((tile_rows, 1), jnp.float32),   # valid-row-count accumulator
                pltpu.VMEM((tile_rows, C), jnp.int32),     # hoisted lane-index table
            ],
        ),
        compiler_params=pltpu.CompilerParams(
            dimension_semantics=("parallel", "arbitrary"),
            vmem_limit_bytes=vmem_limit,
        ),
        cost_estimate=cost,
    )(outputs, labels2d)

    # Combine per-split partials; mean over selected rows (NaN if none selected).
    return jnp.sum(sum_out) / jnp.sum(cnt_out)


def _ploss_ref(outputs, labels, num_class):
    """Pure-JAX reference mirroring the PyTorch module."""
    outputs = outputs.astype(jnp.float32)
    mask = (labels <= num_class - 1).astype(jnp.float32)
    logp = jax.nn.log_softmax(outputs, axis=-1)
    per_row = -jnp.take_along_axis(logp, labels[:, None].astype(jnp.int32), axis=-1)[:, 0]
    return jnp.sum(per_row * mask) / jnp.sum(mask)


if __name__ == "__main__":
    key = jax.random.PRNGKey(0)
    k_logits, k_labels = jax.random.split(key)

    N, C = 16, 8          # 16 samples, 8 logit classes
    num_class = 6         # PLoss(k=6): keep rows with label <= 5

    outputs = jax.random.normal(k_logits, (N, C), dtype=jnp.float32)
    labels = jax.random.randint(k_labels, (N,), 0, C, dtype=jnp.int32)

    loss = ploss(outputs, labels, num_class)
    jax.block_until_ready(loss)

    ref = _ploss_ref(outputs, labels, num_class)
    assert jnp.allclose(loss, ref, atol=1e-5, rtol=1e-5), (loss, ref)

    print("KERNEL_OK")
</pallas_src>

<mosaic_0001>
module attributes {stable_mosaic.version = 11 : i64} {
  func.func @kernel(%arg0: i32, %arg1: i32, %arg2: memref<16x8xf32, #tpu.memory_space<vmem>>, %arg3: memref<16x1xi32, #tpu.memory_space<vmem>>, %arg4: memref<1x1x1xf32, #tpu.memory_space<vmem>>, %arg5: memref<1x1x1xf32, #tpu.memory_space<vmem>>, %arg6: memref<16x1xf32, #tpu.memory_space<vmem>>, %arg7: memref<16x1xf32, #tpu.memory_space<vmem>>, %arg8: memref<16x8xi32, #tpu.memory_space<vmem>>) attributes {dimension_semantics = [#tpu.dimension_semantics<parallel>, #tpu.dimension_semantics<arbitrary>], iteration_bounds = array<i64: 1, 1>, scalar_prefetch = 0 : i64, scratch_operands = 3 : i64, tpu.core_type = #tpu.core_type<tc>, window_params = [{transform_indices = @transform_0, window_bounds = array<i64: 16, 8>}, {transform_indices = @transform_1, window_bounds = array<i64: 16, 1>}, {transform_indices = @transform_2, window_bounds = array<i64: 1, 1, 1>}, {transform_indices = @transform_3, window_bounds = array<i64: 1, 1, 1>}]} {
    %c0_i32 = arith.constant 0 : i32
    %0 = arith.cmpi eq, %arg1, %c0_i32 : i32
    %1 = arith.extui %0 : i1 to i32
    %c0_i32_0 = arith.constant 0 : i32
    %2 = arith.cmpi ne, %1, %c0_i32_0 : i32
    scf.if %2 {
      %cst_21 = arith.constant 0.000000e+00 : f32
      %46 = vector.broadcast %cst_21 : f32 to vector<16x1xf32>
      %c0_22 = arith.constant 0 : index
      %c0_23 = arith.constant 0 : index
      %47 = vector.load %arg6[%c0_22, %c0_23] : memref<16x1xf32, #tpu.memory_space<vmem>>, vector<16x1xf32>
      tpu.vector_store %arg6[%c0_22, %c0_23], %46 {strides = array<i32>} : memref<16x1xf32, #tpu.memory_space<vmem>>, vector<16x1xf32>,
      %cst_24 = arith.constant 0.000000e+00 : f32
      %48 = vector.broadcast %cst_24 : f32 to vector<16x1xf32>
      %c0_25 = arith.constant 0 : index
      %c0_26 = arith.constant 0 : index
      %49 = vector.load %arg7[%c0_25, %c0_26] : memref<16x1xf32, #tpu.memory_space<vmem>>, vector<16x1xf32>
      tpu.vector_store %arg7[%c0_25, %c0_26], %48 {strides = array<i32>} : memref<16x1xf32, #tpu.memory_space<vmem>>, vector<16x1xf32>,
      %50 = tpu.iota {dimensions = array<i32: 1>} : vector<16x8xi32>
      %c0_27 = arith.constant 0 : index
      %c0_28 = arith.constant 0 : index
      %51 = vector.load %arg8[%c0_27, %c0_28] : memref<16x8xi32, #tpu.memory_space<vmem>>, vector<16x8xi32>
      tpu.vector_store %arg8[%c0_27, %c0_28], %50 {strides = array<i32>} : memref<16x8xi32, #tpu.memory_space<vmem>>, vector<16x8xi32>,
    } else {
    }
    %c0 = arith.constant 0 : index
    %c0_1 = arith.constant 0 : index
    %3 = vector.load %arg2[%c0, %c0_1] : memref<16x8xf32, #tpu.memory_space<vmem>>, vector<16x8xf32>
    %c0_2 = arith.constant 0 : index
    %c0_3 = arith.constant 0 : index
    %4 = vector.load %arg3[%c0_2, %c0_3] : memref<16x1xi32, #tpu.memory_space<vmem>>, vector<16x1xi32>
    %cst = arith.constant dense<0xFF800000> : vector<16xf32>
    %5 = vector.multi_reduction <maximumf>, %3, %cst [1] : vector<16x8xf32> to vector<16xf32>
    %6 = vector.shape_cast %5 : vector<16xf32> to vector<16x1xf32>
    %7 = vector.broadcast %6 : vector<16x1xf32> to vector<16x8xf32>
    %8 = arith.subf %3, %7 : vector<16x8xf32>
    %9 = math.exp %8 : vector<16x8xf32>
    %cst_4 = arith.constant dense<0.000000e+00> : vector<16xf32>
    %10 = vector.multi_reduction <add>, %9, %cst_4 [1] : vector<16x8xf32> to vector<16xf32>
    %11 = vector.shape_cast %10 : vector<16xf32> to vector<16x1xf32>
    %12 = math.log %11 : vector<16x1xf32>
    %c0_5 = arith.constant 0 : index
    %c0_6 = arith.constant 0 : index
    %13 = vector.load %arg8[%c0_5, %c0_6] : memref<16x8xi32, #tpu.memory_space<vmem>>, vector<16x8xi32>
    %14 = vector.broadcast %4 : vector<16x1xi32> to vector<16x8xi32>
    %15 = arith.cmpi eq, %13, %14 : vector<16x8xi32>
    %cst_7 = arith.constant 0.000000e+00 : f32
    %16 = vector.broadcast %cst_7 : f32 to vector<16x8xf32>
    %17 = arith.select %15, %3, %16 : vector<16x8xi1>, vector<16x8xf32>
    %cst_8 = arith.constant dense<0.000000e+00> : vector<16xf32>
    %18 = vector.multi_reduction <add>, %17, %cst_8 [1] : vector<16x8xf32> to vector<16xf32>
    %19 = vector.shape_cast %18 : vector<16xf32> to vector<16x1xf32>
    %20 = arith.addf %12, %6 : vector<16x1xf32>
    %21 = arith.subf %20, %19 : vector<16x1xf32>
    %c1_i32 = arith.constant 1 : i32
    %22 = arith.muli %arg0, %c1_i32 : i32
    %23 = arith.addi %22, %arg1 : i32
    %c16_i32 = arith.constant 16 : i32
    %24 = arith.muli %23, %c16_i32 : i32
    %25 = tpu.iota {dimensions = array<i32: 0>} : vector<16x1xi32>
    %26 = vector.broadcast %24 : i32 to vector<16x1xi32>
    %27 = arith.addi %26, %25 : vector<16x1xi32>
    %c5_i32 = arith.constant 5 : i32
    %28 = vector.broadcast %c5_i32 : i32 to vector<16x1xi32>
    %29 = arith.cmpi sle, %4, %28 : vector<16x1xi32>
    %c16_i32_9 = arith.constant 16 : i32
    %30 = vector.broadcast %c16_i32_9 : i32 to vector<16x1xi32>
    %31 = arith.cmpi slt, %27, %30 : vector<16x1xi32>
    %32 = arith.andi %29, %31 : vector<16x1xi1>
    %c0_10 = arith.constant 0 : index
    %c0_11 = arith.constant 0 : index
    %33 = vector.load %arg6[%c0_10, %c0_11] : memref<16x1xf32, #tpu.memory_space<vmem>>, vector<16x1xf32>
    %cst_12 = arith.constant 0.000000e+00 : f32
    %34 = vector.broadcast %cst_12 : f32 to vector<16x1xf32>
    %35 = arith.select %32, %21, %34 : vector<16x1xi1>, vector<16x1xf32>
    %36 = arith.addf %33, %35 : vector<16x1xf32>
    %c0_13 = arith.constant 0 : index
    %c0_14 = arith.constant 0 : index
    %37 = vector.load %arg6[%c0_13, %c0_14] : memref<16x1xf32, #tpu.memory_space<vmem>>, vector<16x1xf32>
    tpu.vector_store %arg6[%c0_13, %c0_14], %36 {strides = array<i32>} : memref<16x1xf32, #tpu.memory_space<vmem>>, vector<16x1xf32>,
    %c0_15 = arith.constant 0 : index
    %c0_16 = arith.constant 0 : index
    %38 = vector.load %arg7[%c0_15, %c0_16] : memref<16x1xf32, #tpu.memory_space<vmem>>, vector<16x1xf32>
    %39 = arith.extui %32 : vector<16x1xi1> to vector<16x1xi32>
    %40 = arith.sitofp %39 : vector<16x1xi32> to vector<16x1xf32>
    %41 = arith.addf %38, %40 : vector<16x1xf32>
    %c0_17 = arith.constant 0 : index
    %c0_18 = arith.constant 0 : index
    %42 = vector.load %arg7[%c0_17, %c0_18] : memref<16x1xf32, #tpu.memory_space<vmem>>, vector<16x1xf32>
    tpu.vector_store %arg7[%c0_17, %c0_18], %41 {strides = array<i32>} : memref<16x1xf32, #tpu.memory_space<vmem>>, vector<16x1xf32>,
    %c0_i32_19 = arith.constant 0 : i32
    %43 = arith.cmpi eq, %arg1, %c0_i32_19 : i32
    %44 = arith.extui %43 : i1 to i32
    %c0_i32_20 = arith.constant 0 : i32
    %45 = arith.cmpi ne, %44, %c0_i32_20 : i32
    scf.if %45 {
      %c0_21 = arith.constant 0 : index
      %c0_22 = arith.constant 0 : index
      %46 = vector.load %arg6[%c0_21, %c0_22] : memref<16x1xf32, #tpu.memory_space<vmem>>, vector<16x1xf32>
      %47 = vector.shape_cast %46 : vector<16x1xf32> to vector<1x16x1xf32>
      %cst_23 = arith.constant dense<0.000000e+00> : vector<1xf32>
      %48 = vector.multi_reduction <add>, %47, %cst_23 [1, 2] : vector<1x16x1xf32> to vector<1xf32>
      %49 = vector.shape_cast %48 : vector<1xf32> to vector<1x1x1xf32>
      %50 = vector.extract %49[0, 0, 0] : f32 from vector<1x1x1xf32>
      %51 = vector.broadcast %50 : f32 to vector<1x1xf32>
      %c0_24 = arith.constant 0 : index
      %c0_25 = arith.constant 0 : index
      %c0_26 = arith.constant 0 : index
      %52 = vector.load %arg4[%c0_24, %c0_25, %c0_26] : memref<1x1x1xf32, #tpu.memory_space<vmem>>, vector<1x1x1xf32>
      %53 = vector.shape_cast %52 : vector<1x1x1xf32> to vector<1x1xf32>
      %54 = vector.shape_cast %51 : vector<1x1xf32> to vector<1x1x1xf32>
      tpu.vector_store %arg4[%c0_24, %c0_25, %c0_26], %54 {strides = array<i32>} : memref<1x1x1xf32, #tpu.memory_space<vmem>>, vector<1x1x1xf32>,
      %c0_27 = arith.constant 0 : index
      %c0_28 = arith.constant 0 : index
      %55 = vector.load %arg7[%c0_27, %c0_28] : memref<16x1xf32, #tpu.memory_space<vmem>>, vector<16x1xf32>
      %56 = vector.shape_cast %55 : vector<16x1xf32> to vector<1x16x1xf32>
      %cst_29 = arith.constant dense<0.000000e+00> : vector<1xf32>
      %57 = vector.multi_reduction <add>, %56, %cst_29 [1, 2] : vector<1x16x1xf32> to vector<1xf32>
      %58 = vector.shape_cast %57 : vector<1xf32> to vector<1x1x1xf32>
      %59 = vector.extract %58[0, 0, 0] : f32 from vector<1x1x1xf32>
      %60 = vector.broadcast %59 : f32 to vector<1x1xf32>
      %c0_30 = arith.constant 0 : index
      %c0_31 = arith.constant 0 : index
      %c0_32 = arith.constant 0 : index
      %61 = vector.load %arg5[%c0_30, %c0_31, %c0_32] : memref<1x1x1xf32, #tpu.memory_space<vmem>>, vector<1x1x1xf32>
      %62 = vector.shape_cast %61 : vector<1x1x1xf32> to vector<1x1xf32>
      %63 = vector.shape_cast %60 : vector<1x1xf32> to vector<1x1x1xf32>
      tpu.vector_store %arg5[%c0_30, %c0_31, %c0_32], %63 {strides = array<i32>} : memref<1x1x1xf32, #tpu.memory_space<vmem>>, vector<1x1x1xf32>,
    } else {
    }
    return
  }
  func.func @transform_0(%arg0: i32, %arg1: i32) -> (i32, i32) {
    %c1_i32 = arith.constant 1 : i32
    %0 = arith.muli %arg0, %c1_i32 : i32
    %1 = arith.addi %0, %arg1 : i32
    %c0_i32 = arith.constant 0 : i32
    %2 = arith.minsi %1, %c0_i32 : i32
    %c0_i32_0 = arith.constant 0 : i32
    %c0_i32_1 = arith.constant 0 : i32
    return %2, %c0_i32_0 : i32, i32
  }
  func.func @transform_1(%arg0: i32, %arg1: i32) -> (i32, i32) {
    %c1_i32 = arith.constant 1 : i32
    %0 = arith.muli %arg0, %c1_i32 : i32
    %1 = arith.addi %0, %arg1 : i32
    %c0_i32 = arith.constant 0 : i32
    %2 = arith.minsi %1, %c0_i32 : i32
    %c0_i32_0 = arith.constant 0 : i32
    %c0_i32_1 = arith.constant 0 : i32
    return %2, %c0_i32_0 : i32, i32
  }
  func.func @transform_2(%arg0: i32, %arg1: i32) -> (i32, i32, i32) {
    %c0_i32 = arith.constant 0 : i32
    %c0_i32_0 = arith.constant 0 : i32
    %c0_i32_1 = arith.constant 0 : i32
    return %arg0, %c0_i32, %c0_i32_0 : i32, i32, i32
  }
  func.func @transform_3(%arg0: i32, %arg1: i32) -> (i32, i32, i32) {
    %c0_i32 = arith.constant 0 : i32
    %c0_i32_0 = arith.constant 0 : i32
    %c0_i32_1 = arith.constant 0 : i32
    return %arg0, %c0_i32, %c0_i32_0 : i32, i32, i32
  }
}

</mosaic_0001>

<llo_original>
// kernel: tpu_custom_call.1
$region0: #{tpu_custom_call.1}
  #allocation0 [shape = 'u32[]', space=smem, size = 0x4, offset = 0x4, fixed_abs, tag = 'smem constant byte address 0x4 - core index']
  #allocation1 [shape = 'u32[144,128]{1,0:T(1,128)}', space=vmem, size = 0x12000, scoped, tag = 'internal scratch']
  #allocation2 [shape = 'f32[16,1]{1,0:T(8,128)}', space=vmem, size = 0x2000, scoped, tag = 'scratch operand']
  #allocation3 [shape = 'f32[16,1]{1,0:T(8,128)}', space=vmem, size = 0x2000, scoped, tag = 'scratch operand']
  #allocation4 [shape = 's32[16,8]{1,0:T(8,128)}', space=vmem, size = 0x2000, scoped, tag = 'scratch operand']
  %s0 = inlined_call_operand.vmem [shape: f32[16,8], index: 0, kind: input, shape index: {}]
  %s1 = inlined_call_operand.vmem [shape: s32[16,1], index: 1, kind: input, shape index: {}]
  %s2 = inlined_call_operand.hbm [shape: f32[1,1,1], index: 2, kind: output, shape index: {0}]
  %s3 = inlined_call_operand.hbm [shape: f32[1,1,1], index: 3, kind: output, shape index: {1}]
  %4 = xla_tuple %s2, %s3
  %s5 = sld [smem:[#allocation0]]
  $region34: #{tpu_custom_call.1} parent=0
    _
  %s7 = ssub.s32 1, %s5
  %s8 = scalar_select 0, %s7, %s5
  $region1: #{tpu_custom_call.1} parent=0
    #allocation5 [shape = 'u8[512]{0}', space=vmem, size = 0x400, scoped, tag = 'output window, operand 0, single buffered']
    #allocation6 [shape = 's32[1]{0}', space=sflag, size = 0x4, scoped, tag = 'scoped memory for tpu_custom_call.1']
    #allocation7 [shape = 'u8[512]{0}', space=vmem, size = 0x400, scoped, tag = 'output window, operand 1, single buffered']
    #allocation8 [shape = 's32[1]{0}', space=sflag, size = 0x4, scoped, tag = 'scoped memory for tpu_custom_call.1']
    %9 = vsyncpa [#allocation6], 0
    %10 = vsyncpa [#allocation8], 0
    // Predicated region
    $region2: #{tpu_custom_call.1} parent=1 // pred_check
      _
    $region3: #{tpu_custom_call.1} parent=1 // pred_check_branch
      %12 = sbr.rel (0) target = $region5
    $region4: #{tpu_custom_call.1} parent=1 // pred_region
      %s13 = sadd.s32 0, 0
      %p14 = scmp.lt.s32.totalorder %s13, 0
      %s15 = scalar_select %p14, %s13, 0
      %s16 = smul.u32 2, %s15
      %p17 = scmp.lt.s32.totalorder %s16, 1
      %s18 = scalar_select %p17, %s16, 1
      %s19 = smul.addr %s18, 8
      %s20 = scalar_lea.vmem %s0, %s19
      %s21 = sadd.s32 0, 0
      %p22 = scmp.lt.s32.totalorder %s21, 0
      %s23 = scalar_select %p22, %s21, 0
      %s24 = smul.u32 2, %s23
    $region5: #{tpu_custom_call.1} parent=1 // pred_fallthru
      _
    // Predicated region
    $region6: #{tpu_custom_call.1} parent=1 // pred_check
      _
    $region7: #{tpu_custom_call.1} parent=1 // pred_check_branch
      %26 = sbr.rel (0) target = $region9
    $region8: #{tpu_custom_call.1} parent=1 // pred_region
      %s27 = sadd.s32 0, 0
      %p28 = scmp.lt.s32.totalorder %s27, 0
      %s29 = scalar_select %p28, %s27, 0
      %s30 = smul.u32 2, %s29
      %p31 = scmp.lt.s32.totalorder %s30, 1
      %s32 = scalar_select %p31, %s30, 1
      %s33 = smul.addr %s32, 8
      %s34 = scalar_lea.vmem %s1, %s33
      %s35 = sadd.s32 0, 0
      %p36 = scmp.lt.s32.totalorder %s35, 0
      %s37 = scalar_select %p36, %s35, 0
      %s38 = smul.u32 2, %s37
    $region9: #{tpu_custom_call.1} parent=1 // pred_fallthru
      _
    %s39 = sadd.s32 0, 0
    %p40 = scmp.lt.s32.totalorder %s39, 0
    %s41 = scalar_select %p40, %s39, 0
    %s42 = smul.u32 2, %s41
    %p43 = scmp.lt.s32.totalorder %s42, 1
    %s44 = scalar_select %p43, %s42, 1
    %s45 = smul.addr %s44, 8
    %s46 = scalar_lea.vmem %s0, %s45
    %s47 = sadd.s32 0, 0
    %p48 = scmp.lt.s32.totalorder %s47, 0
    %s49 = scalar_select %p48, %s47, 0
    %s50 = smul.u32 2, %s49
    %p51 = scmp.lt.s32.totalorder %s50, 1
    %s52 = scalar_select %p51, %s50, 1
    %s53 = smul.addr %s52, 8
    %s54 = scalar_lea.vmem %s1, %s53
    %s55 = sadd.s32 0, 0
    %p56 = scmp.lt.s32.totalorder %s55, 0
    %s57 = scalar_select %p56, %s55, 0
    %s58 = smul.u32 2, %s57
    %p59 = scmp.lt.s32.totalorder %s58, 1
    %s60 = scalar_select %p59, %s58, 1
    %s61 = smul.addr %s60, 8
    %s62 = scalar_lea.vmem %s0, %s61
    %s63 = sadd.s32 0, 0
    %p64 = scmp.lt.s32.totalorder %s63, 0
    %s65 = scalar_select %p64, %s63, 0
    %s66 = smul.u32 2, %s65
    %s67 = sadd.s32 0, 0
    %p68 = scmp.lt.s32.totalorder %s67, 0
    %s69 = scalar_select %p68, %s67, 0
    %s70 = smul.u32 2, %s69
    %p71 = scmp.lt.s32.totalorder %s70, 1
    %s72 = scalar_select %p71, %s70, 1
    %s73 = smul.addr %s72, 8
    %s74 = scalar_lea.vmem %s1, %s73
    %s75 = sadd.s32 0, 0
    %p76 = scmp.lt.s32.totalorder %s75, 0
    %s77 = scalar_select %p76, %s75, 0
    %s78 = smul.u32 2, %s77
    %p79 = scmp.eq.s32.totalorder 0, 0
    // Predicated region
    $region10: #{tpu_custom_call.1} parent=1 // pred_check
      %p80 = pneg %p79
    $region11: #{tpu_custom_call.1} parent=1 // pred_check_branch
      %82 = sbr.rel (%p80) target = $region13
    $region12: #{tpu_custom_call.1} parent=1 // pred_region
      %vm83 = vcmask 7168
      %84 = vst.msk [vmem:[#allocation2] sm:$0xff] %vm83, 0.0
      %85 = vst.msk [vmem:[#allocation2 + $0x8] sm:$0xff] %vm83, 0.0
      %86 = vst.msk [vmem:[#allocation3] sm:$0xff] %vm83, 0.0
      %87 = vst.msk [vmem:[#allocation3 + $0x8] sm:$0xff] %vm83, 0.0
      %v88 = vlaneseq
      %v89 = vand.u32 %v88, 127
      %vm90 = vcmask 64512
      %91 = vst.msk [vmem:[#allocation4] sm:$0xff] %vm90, %v89
      %92 = vst.msk [vmem:[#allocation4 + $0x8] sm:$0xff] %vm90, %v89
    $region13: #{tpu_custom_call.1} parent=1 // pred_fallthru
      _
    %v93 = vld [vmem:[%s62] sm:$0xff]
    %v94 = vld [vmem:[%s62 + $0x8] sm:$0xff]
    %v95 = vld [vmem:[%s74] sm:$0xff]
    %v96 = vld [vmem:[%s74 + $0x8] sm:$0xff]
    %vm97 = vcmask 64512
    %v98 = vsel %vm97, %v93, -inf
    %99 = vmax.xlane.f32.xlu0 %v98
    %v100 = vpop.xlane.xlu0 %99
    %v101 = vsel %vm97, %v94, -inf
    %102 = vmax.xlane.f32.xlu0 %v101
    %v103 = vpop.xlane.xlu0 %102
    %v104 = vsub.f32 %v93, %v100
    %v105 = vsub.f32 %v94, %v103
    %v106 = vmul.f32 %v104, 1.442695
    %v107 = vpow.pop %v106
    %v108 = vmul.f32 %v105, 1.442695
    %v109 = vpow.pop %v108
    %v110 = vsel %vm97, %v107, 0.0
    %111 = vadd.xlane.f32.xlu0 %v110
    %v112 = vpop.xlane.xlu0 %111
    %v113 = vsel %vm97, %v109, 0.0
    %114 = vadd.xlane.f32.xlu0 %v113
    %v115 = vpop.xlane.xlu0 %114
    %v116 = vlog2.pop %v112
    %v117 = vmul.f32 %v116, 0.6931472
    %v118 = vlog2.pop %v115
    %v119 = vmul.f32 %v118, 0.6931472
    %v120 = vld [vmem:[#allocation4] sm:$0xff]
    %v121 = vld [vmem:[#allocation4 + $0x8] sm:$0xff]
    %122 = vset.pattern.permute.xlu0 0
    %123 = vperm.xlu0 %122, %v95
    %v124 = vpop.permute.xlu0 %123
    %125 = vset.pattern.permute.xlu0 0
    %126 = vperm.xlu0 %125, %v96
    %v127 = vpop.permute.xlu0 %126
    %vm128 = vcmp.eq.s32.totalorder %v120, %v124
    %vm129 = vcmp.eq.s32.totalorder %v121, %v127
    %v130 = vsel %vm128, %v93, 0.0
    %v131 = vsel %vm129, %v94, 0.0
    %v132 = vsel %vm97, %v130, 0.0
    %133 = vadd.xlane.f32.xlu0 %v132
    %v134 = vpop.xlane.xlu0 %133
    %v135 = vsel %vm97, %v131, 0.0
    %136 = vadd.xlane.f32.xlu0 %v135
    %v137 = vpop.xlane.xlu0 %136
    %v138 = vadd.f32 %v117, %v100
    %v139 = vadd.f32 %v119, %v103
    %v140 = vsub.f32 %v138, %v134
    %v141 = vsub.f32 %v139, %v137
    %s142 = sadd.s32 0, 0
    %s143 = smul.u32 %s142, 16
    %v144 = vlaneseq
    %v145 = vshrl.u32 %v144, 7
    %v146 = vadd.s32 %v145, 8
    %v147 = vstv %s143
    %v148 = vadd.s32 %v147, %v145
    %v149 = vadd.s32 %v147, %v146
    %vm150 = vcmp.le.s32.totalorder %v95, 5
    %vm151 = vcmp.le.s32.totalorder %v96, 5
    %vm152 = vcmp.lt.s32.totalorder %v148, 16
    %vm153 = vcmp.lt.s32.totalorder %v149, 16
    %vm154 = vmand %vm150, %vm152
    %vm155 = vmand %vm151, %vm153
    %v156 = vld [vmem:[#allocation2] sm:$0xff]
    %v157 = vld [vmem:[#allocation2 + $0x8] sm:$0xff]
    %v158 = vsel %vm154, %v140, 0.0
    %v159 = vsel %vm155, %v141, 0.0
    %v160 = vadd.f32 %v156, %v158
    %v161 = vadd.f32 %v157, %v159
    %vm162 = vcmask 7168
    %163 = vst.msk [vmem:[#allocation2] sm:$0xff] %vm162, %v160
    %164 = vst.msk [vmem:[#allocation2 + $0x8] sm:$0xff] %vm162, %v161
    %v165 = vld [vmem:[#allocation3] sm:$0xff]
    %v166 = vld [vmem:[#allocation3 + $0x8] sm:$0xff]
    %v167 = vsel %vm154, 1, 0
    %v168 = vsel %vm155, 1, 0
    %v169 = vcvt.s32.f32 %v167
    %v170 = vcvt.s32.f32 %v168
    %v171 = vadd.f32 %v165, %v169
    %v172 = vadd.f32 %v166, %v170
    %173 = vst.msk [vmem:[#allocation3] sm:$0xff] %vm162, %v171
    %174 = vst.msk [vmem:[#allocation3 + $0x8] sm:$0xff] %vm162, %v172
    // Predicated region
    $region14: #{tpu_custom_call.1} parent=1 // pred_check
      %p175 = pneg %p79
    $region15: #{tpu_custom_call.1} parent=1 // pred_check_branch
      %177 = sbr.rel (%p175) target = $region17
    $region16: #{tpu_custom_call.1} parent=1 // pred_region
      %v178 = vld [vmem:[#allocation2] sm:$0xff]
      %v179 = vld [vmem:[#allocation2 + $0x8] sm:$0xff]
      %v180 = vsel %vm162, %v178, 0.0
      %v181 = vsel %vm162, %v179, 0.0
      %v182 = vadd.f32 %v180, %v181
      %183 = vadd.xlane.f32.xlu0 %v182
      %v184 = vpop.xlane.xlu0 %183
      %v185 = vrot.slane %v184, 4
      %v186 = vadd.f32 %v184, %v185
      %v187 = vrot.slane %v186, 2
      %v188 = vadd.f32 %v186, %v187
      %v189 = vrot.slane %v188, 1
      %v190 = vadd.f32 %v188, %v189
      %s191 = vtos %v190
      %v192 = vstv %s191
      %vm193 = vcmask 0
      %194 = vst.msk [vmem:[#allocation5] sm:$0x1] %vm193, %v192
      %v195 = vld [vmem:[#allocation3] sm:$0xff]
      %v196 = vld [vmem:[#allocation3 + $0x8] sm:$0xff]
      %v197 = vsel %vm162, %v195, 0.0
      %v198 = vsel %vm162, %v196, 0.0
      %v199 = vadd.f32 %v197, %v198
      %200 = vadd.xlane.f32.xlu0 %v199
      %v201 = vpop.xlane.xlu0 %200
      %v202 = vrot.slane %v201, 4
      %v203 = vadd.f32 %v201, %v202
      %v204 = vrot.slane %v203, 2
      %v205 = vadd.f32 %v203, %v204
      %v206 = vrot.slane %v205, 1
      %v207 = vadd.f32 %v205, %v206
      %s208 = vtos %v207
      %v209 = vstv %s208
      %210 = vst.msk [vmem:[#allocation7] sm:$0x1] %vm193, %v209
    $region17: #{tpu_custom_call.1} parent=1 // pred_fallthru
      _
    // Predicated region
    $region18: #{tpu_custom_call.1} parent=1 // pred_check
      _
    $region19: #{tpu_custom_call.1} parent=1 // pred_check_branch
      %212 = sbr.rel (0) target = $region21
    $region20: #{tpu_custom_call.1} parent=1 // pred_region
      %s214 = ssub.s32 16, 16
      %215 = vsyncadd [#allocation6], %s214
      %s217 = sshll.u32 [#allocation5], 4
      %s218 = int_to_ptr.vmem [resolvable:$true] %s217
      %220 = dma.vmem_to_hbm [thread:$0]  %s218, 16, %s2, [#allocation6]
    $region21: #{tpu_custom_call.1} parent=1 // pred_fallthru
      _
    // Predicated region
    $region22: #{tpu_custom_call.1} parent=1 // pred_check
      _
    $region23: #{tpu_custom_call.1} parent=1 // pred_check_branch
      %222 = sbr.rel (0) target = $region25
    $region24: #{tpu_custom_call.1} parent=1 // pred_region
      %s224 = ssub.s32 16, 16
      %225 = vsyncadd [#allocation8], %s224
      %s227 = sshll.u32 [#allocation7], 4
      %s228 = int_to_ptr.vmem [resolvable:$true] %s227
      %230 = dma.vmem_to_hbm [thread:$0]  %s228, 16, %s3, [#allocation8]
    $region25: #{tpu_custom_call.1} parent=1 // pred_fallthru
      _
    // Predicated region
    $region26: #{tpu_custom_call.1} parent=1 // pred_check
      _
    $region27: #{tpu_custom_call.1} parent=1 // pred_check_branch
      %232 = sbr.rel (0) target = $region29
    $region28: #{tpu_custom_call.1} parent=1 // pred_region
      %233 = dma.done [#allocation6], 16
    $region29: #{tpu_custom_call.1} parent=1 // pred_fallthru
      _
    // Predicated region
    $region30: #{tpu_custom_call.1} parent=1 // pred_check
      _
    $region31: #{tpu_custom_call.1} parent=1 // pred_check_branch
      %235 = sbr.rel (0) target = $region33
    $region32: #{tpu_custom_call.1} parent=1 // pred_region
      %236 = dma.done [#allocation8], 16
    $region33: #{tpu_custom_call.1} parent=1 // pred_fallthru
      _
    %237 = vsyncpa [#allocation6], 1
    %238 = vsyncpa [#allocation8], 1

</llo_original>
